<compile_context>
chip_gen: v7x
topology: tpu7x:2x2x1
jax: 0.10.0
libtpu: 0.0.40
codegen_flags: <defaults>
</compile_context>

<pallas_src>
import functools

import jax
import jax.numpy as jnp
from jax.experimental import pallas as pl
from jax.experimental.pallas import tpu as pltpu


def _round_up(x, m):
    return ((x + m - 1) // m) * m


def _vmem_physical_bytes():
    try:
        return int(pltpu.get_tpu_info().vmem_capacity_bytes)
    except Exception:
        return 64 << 20  # conservative fallback (v7x per-TensorCore VMEM)


def _choose_tm(M):
    # Big row-tiles (mem-bound kernels reach ~85% of HBM roofline around 512
    # rows), multiple of 16 (bf16 sublane packing), and at least 2 grid steps
    # when M allows it so v7x's two TensorCores both get work.
    if M >= 1024:
        return 512
    if M >= 64:
        return _round_up(pl.cdiv(M, 2), 16)
    return M  # tiny: one full-M block (block dim == full array dim is legal)


# ----------------------------------------------------------------------------
# Kernels
# ----------------------------------------------------------------------------
def _single_block_kernel(x_ref, w_ref, o_ref):
    # Whole K and whole (128-padded) N in one block; the W block index is
    # constant across the 1-D M grid so it stays VMEM-resident (fetched once).
    # X arrives in its source dtype and is cast per-tile (free on the VPU).
    x = x_ref[...].astype(w_ref.dtype)
    o_ref[...] = jnp.dot(
        x, w_ref[...], preferred_element_type=jnp.float32
    ).astype(o_ref.dtype)


def _tiled_kernel(x_ref, w_ref, o_ref, acc_ref):
    # General (M, N, K) tiling; K is the last ("arbitrary") grid axis.
    @pl.when(pl.program_id(2) == 0)
    def _():
        acc_ref[...] = jnp.zeros_like(acc_ref)

    acc_ref[...] += jnp.dot(
        x_ref[...].astype(w_ref.dtype), w_ref[...],
        preferred_element_type=jnp.float32,
    )

    @pl.when(pl.program_id(2) == pl.num_programs(2) - 1)
    def _():
        o_ref[...] = acc_ref[...].astype(o_ref.dtype)


# ----------------------------------------------------------------------------
# ScaleupEmbedding forward
# ----------------------------------------------------------------------------
def scaleup_embedding(x, e, patch_size, *, compute_dtype=jnp.bfloat16,
                      out_dtype=None, min_pallas_macs=1 << 20,
                      _force_tiled_tk=None):
    """x: (B, S, C); e: (O, C, P); returns (B, S // P, O).

    compute_dtype=bf16 uses the MXU fast path with f32 accumulation; pass
    jnp.float32 for exact parity with the f32 PyTorch conv1d.  out_dtype
    defaults to x.dtype; pass jnp.bfloat16 to halve the output HBM stream.
    """
    B, S, C = x.shape
    O, C2, P = e.shape
    assert C == C2 and P == patch_size and S % P == 0
    T = S // P
    M, K, N = B * T, P * C, O
    out_dtype = x.dtype if out_dtype is None else jnp.dtype(out_dtype)

    # Patchify is a pure view; the weight transform is a one-time parameter
    # transform (constant-folded under jit; pre-compute once in a real model).
    x_flat = x.reshape(M, K)
    w = jnp.transpose(e, (2, 1, 0)).reshape(K, N)

    if _force_tiled_tk is None and M * K * N < min_pallas_macs:
        # Micro-shapes: pallas_call launch / pipeline-prime overhead dominates.
        y = jnp.dot(x_flat, w, preferred_element_type=jnp.float32)
        return y.astype(out_dtype).reshape(B, T, N)

    # Pad only the small weight so output stores are lane-dense (128-multiple).
    Np = _round_up(N, 128)
    w = w.astype(compute_dtype)
    if Np != N:
        w = jnp.pad(w, ((0, 0), (0, Np - N)))

    x_item = x_flat.dtype.itemsize
    w_item = jnp.dtype(compute_dtype).itemsize
    o_item = out_dtype.itemsize

    # Chip-aware VMEM budget: 64 MiB physical on v7x, 128 MiB on v5e/v6e.
    phys = _vmem_physical_bytes()
    budget = min(phys // 2, 48 << 20)
    vmem_limit = int(min(phys * 3 // 4, budget + (16 << 20)))

    tm = _choose_tm(M)

    def single_ws(tm_):  # double-buffered working set of the fast path
        return 2 * (tm_ * K * x_item + K * Np * w_item + tm_ * Np * o_item)

    use_single = _force_tiled_tk is None
    if use_single:
        while single_ws(tm) > budget and tm > 64:
            tm = max(64, _round_up(tm // 2, 16))
        use_single = single_ws(tm) <= budget

    if use_single:
        # ---- weight-resident fast path: 1-D grid over M row-tiles ----------
        gm = pl.cdiv(M, tm)
        cost = pl.CostEstimate(
            flops=2 * M * N * K, transcendentals=0,
            bytes_accessed=M * K * x_item + K * Np * w_item + M * Np * o_item)
        y = pl.pallas_call(
            _single_block_kernel,
            out_shape=jax.ShapeDtypeStruct((M, Np), out_dtype),
            grid_spec=pltpu.PrefetchScalarGridSpec(
                num_scalar_prefetch=0,
                grid=(gm,),
                in_specs=[
                    pl.BlockSpec((tm, K), lambda i: (i, 0)),   # X row-tile
                    pl.BlockSpec((K, Np), lambda i: (0, 0)),   # whole W, DMA'd once
                ],
                out_specs=pl.BlockSpec((tm, Np), lambda i: (i, 0)),
            ),
            compiler_params=pltpu.CompilerParams(
                dimension_semantics=("parallel",),
                vmem_limit_bytes=vmem_limit),
            cost_estimate=cost,
        )(x_flat, w)
    else:
        # ---- general tiled path (weight / K too large for one block) -------
        tn = 512 if Np % 512 == 0 else (256 if Np % 256 == 0 else 128)
        tk = 512 if _force_tiled_tk is None else int(_force_tiled_tk)
        tk = min(_round_up(tk, 128), _round_up(K, 128))
        Kp = _round_up(K, tk)
        if Kp != K:
            # K-reduction tiling needs zeros in the padded K range (rare path;
            # realistic P*C fits the single-block path above).
            x_flat = jnp.pad(x_flat, ((0, 0), (0, Kp - K)))
            w = jnp.pad(w, ((0, Kp - K), (0, 0)))
        gm, gn, gk = pl.cdiv(M, tm), Np // tn, Kp // tk
        cost = pl.CostEstimate(
            flops=2 * M * N * K, transcendentals=0,
            bytes_accessed=gn * M * Kp * x_item + gm * Kp * Np * w_item
                           + M * Np * o_item)
        y = pl.pallas_call(
            _tiled_kernel,
            out_shape=jax.ShapeDtypeStruct((M, Np), out_dtype),
            grid_spec=pltpu.PrefetchScalarGridSpec(
                num_scalar_prefetch=0,
                grid=(gm, gn, gk),
                in_specs=[
                    pl.BlockSpec((tm, tk), lambda i, j, k: (i, k)),
                    pl.BlockSpec((tk, tn), lambda i, j, k: (k, j)),
                ],
                out_specs=pl.BlockSpec((tm, tn), lambda i, j, k: (i, j)),
                scratch_shapes=[pltpu.VMEM((tm, tn), jnp.float32)],
            ),
            compiler_params=pltpu.CompilerParams(
                dimension_semantics=("parallel", "parallel", "arbitrary"),
                vmem_limit_bytes=vmem_limit),
            cost_estimate=cost,
        )(x_flat, w)

    if Np != N:
        y = y[:, :N]
    return y.reshape(B, T, N)


if __name__ == "__main__":
    key = jax.random.PRNGKey(0)

    def ref_embed(x, e):
        B, S, C = x.shape
        O, _, P = e.shape
        return jnp.einsum("btpc,ocp->bto", x.reshape(B, S // P, P, C), e,
                          precision=jax.lax.Precision.HIGHEST)

    def max_rel_err(y, ref):
        return float(jnp.max(jnp.abs(y - ref)) / jnp.max(jnp.abs(ref)))

    # --- Case 1: small module-consistent shapes; force the Pallas path ------
    B, S, C, O, P = 2, 16, 32, 32, 4
    k1, k2 = jax.random.split(key)
    x = jax.random.normal(k1, (B, S, C), dtype=jnp.float32)
    e = jax.random.normal(k2, (O, C, P), dtype=jnp.float32)
    emb = jax.jit(functools.partial(scaleup_embedding, patch_size=P,
                                    min_pallas_macs=0))
    y = jax.block_until_ready(emb(x, e))
    assert y.shape == (B, S // P, O), y.shape
    assert max_rel_err(y, ref_embed(x, e)) < 2e-2        # bf16 MXU path

    # --- Case 2: medium shapes; default weight-resident single-block path ---
    B2, S2, C2, O2, P2 = 4, 256, 64, 256, 4
    x2 = jax.random.normal(k1, (B2, S2, C2), dtype=jnp.float32)
    e2 = jax.random.normal(k2, (O2, C2, P2), dtype=jnp.float32)
    emb2 = jax.jit(functools.partial(scaleup_embedding, patch_size=P2))
    y2 = jax.block_until_ready(emb2(x2, e2))
    assert y2.shape == (B2, S2 // P2, O2), y2.shape
    assert max_rel_err(y2, ref_embed(x2, e2)) < 2e-2

    # --- Case 3: exact-f32 compute, forced K-tiled fallback (padded N) ------
    B3, S3, C3, O3, P3 = 2, 32, 128, 192, 4              # K=512, Np=256
    x3 = jax.random.normal(k1, (B3, S3, C3), dtype=jnp.float32)
    e3 = jax.random.normal(k2, (O3, C3, P3), dtype=jnp.float32)
    emb3 = jax.jit(functools.partial(scaleup_embedding, patch_size=P3,
                                     compute_dtype=jnp.float32,
                                     _force_tiled_tk=128))
    y3 = jax.block_until_ready(emb3(x3, e3))
    assert y3.shape == (B3, S3 // P3, O3), y3.shape
    assert max_rel_err(y3, ref_embed(x3, e3)) < 1e-3

    print("KERNEL_OK")
</pallas_src>

<mosaic_0001>
module attributes {stable_mosaic.version = 11 : i64} {
  func.func @_single_block_kernel(%arg0: i32, %arg1: memref<8x128xf32, #tpu.memory_space<vmem>>, %arg2: memref<128x128xbf16, #tpu.memory_space<vmem>>, %arg3: memref<8x128xf32, #tpu.memory_space<vmem>>) attributes {dimension_semantics = [#tpu.dimension_semantics<parallel>], iteration_bounds = array<i64: 1>, scalar_prefetch = 0 : i64, scratch_operands = 0 : i64, tpu.core_type = #tpu.core_type<tc>, window_params = [{transform_indices = @transform_0, window_bounds = array<i64: 8, 128>}, {pipeline_mode = #tpu.pipeline_mode<synchronous>, transform_indices = @transform_1, window_bounds = array<i64: 128, 128>}, {transform_indices = @transform_2, window_bounds = array<i64: 8, 128>}]} {
    %c0 = arith.constant 0 : index
    %c0_0 = arith.constant 0 : index
    %0 = vector.load %arg1[%c0, %c0_0] : memref<8x128xf32, #tpu.memory_space<vmem>>, vector<8x128xf32>
    %1 = arith.truncf %0 : vector<8x128xf32> to vector<8x128xbf16>
    %c0_1 = arith.constant 0 : index
    %c0_2 = arith.constant 0 : index
    %2 = vector.load %arg2[%c0_1, %c0_2] : memref<128x128xbf16, #tpu.memory_space<vmem>>, vector<128x128xbf16>
    %cst = arith.constant dense<0.000000e+00> : vector<8x128xf32>
    %3 = tpu.matmul %1, %2, %cst {dimension_numbers = #tpu.dot_dimension_numbers<[1], [0], [0], [1], [0, 0, 1, 1], [], []>} : vector<8x128xbf16>, vector<128x128xbf16>, vector<8x128xf32> -> vector<8x128xf32>
    %c0_3 = arith.constant 0 : index
    %c0_4 = arith.constant 0 : index
    %4 = vector.load %arg3[%c0_3, %c0_4] : memref<8x128xf32, #tpu.memory_space<vmem>>, vector<8x128xf32>
    tpu.vector_store %arg3[%c0_3, %c0_4], %3 {strides = array<i32>} : memref<8x128xf32, #tpu.memory_space<vmem>>, vector<8x128xf32>,
    return
  }
  func.func @transform_0(%arg0: i32) -> (i32, i32) {
    %c0_i32 = arith.constant 0 : i32
    %c0_i32_0 = arith.constant 0 : i32
    return %arg0, %c0_i32 : i32, i32
  }
  func.func @transform_1(%arg0: i32) -> (i32, i32) {
    %c0_i32 = arith.constant 0 : i32
    %c0_i32_0 = arith.constant 0 : i32
    %c0_i32_1 = arith.constant 0 : i32
    return %c0_i32, %c0_i32_0 : i32, i32
  }
  func.func @transform_2(%arg0: i32) -> (i32, i32) {
    %c0_i32 = arith.constant 0 : i32
    %c0_i32_0 = arith.constant 0 : i32
    return %arg0, %c0_i32 : i32, i32
  }
}

</mosaic_0001>

<llo_original>
// kernel: scaleup_embedding.1
$region0: #{scaleup_embedding.1}
  #allocation0 [shape = 'u32[]', space=smem, size = 0x4, offset = 0x4, fixed_abs, tag = 'smem constant byte address 0x4 - core index']
  #allocation1 [shape = 'u32[144,128]{1,0:T(1,128)}', space=vmem, size = 0x12000, scoped, tag = 'internal scratch']
  %s0 = inlined_call_operand.vmem [shape: f32[8,128], index: 0, kind: input, shape index: {}]
  %s1 = inlined_call_operand.vmem [shape: bf16[128,128], index: 1, kind: input, shape index: {}]
  %s2 = inlined_call_operand.hbm [shape: f32[8,128], index: 2, kind: output, shape index: {}]
  %s3 = sld [smem:[#allocation0]]
  $region18: #{scaleup_embedding.1} parent=0
    _
  %s5 = ssub.s32 1, %s3
  %s6 = scalar_select 0, %s5, %s3
  $region1: #{scaleup_embedding.1} parent=0
    #allocation2 [shape = 'u8[4096]{0}', space=vmem, size = 0x1000, scoped, tag = 'output window, operand 0, single buffered']
    #allocation3 [shape = 's32[1]{0}', space=sflag, size = 0x4, scoped, tag = 'scoped memory for scaleup_embedding.1']
    %7 = vsyncpa [#allocation3], 0
    // Predicated region
    $region2: #{scaleup_embedding.1} parent=1 // pred_check
      _
    $region3: #{scaleup_embedding.1} parent=1 // pred_check_branch
      %9 = sbr.rel (0) target = $region5
    $region4: #{scaleup_embedding.1} parent=1 // pred_region
      _
    $region5: #{scaleup_embedding.1} parent=1 // pred_fallthru
      _
    // Predicated region
    $region6: #{scaleup_embedding.1} parent=1 // pred_check
      _
    $region7: #{scaleup_embedding.1} parent=1 // pred_check_branch
      %11 = sbr.rel (0) target = $region9
    $region8: #{scaleup_embedding.1} parent=1 // pred_region
      _
    $region9: #{scaleup_embedding.1} parent=1 // pred_fallthru
      _
    %v13 = vld [vmem:[%s0] sm:$0xff]
    %v14 = vpack.c.bf16 %v13, %v13
    %v15 = vld [vmem:[%s1] sm:$0xf]
    %v16 = vld [vmem:[%s1 + $0x4] sm:$0xf]
    %v17 = vld [vmem:[%s1 + $0x8] sm:$0xf]
    %v18 = vld [vmem:[%s1 + $0xc] sm:$0xf]
    %v19 = vld [vmem:[%s1 + $0x10] sm:$0xf]
    %v20 = vld [vmem:[%s1 + $0x14] sm:$0xf]
    %v21 = vld [vmem:[%s1 + $0x18] sm:$0xf]
    %v22 = vld [vmem:[%s1 + $0x1c] sm:$0xf]
    %v23 = vld [vmem:[%s1 + $0x20] sm:$0xf]
    %v24 = vld [vmem:[%s1 + $0x24] sm:$0xf]
    %v25 = vld [vmem:[%s1 + $0x28] sm:$0xf]
    %v26 = vld [vmem:[%s1 + $0x2c] sm:$0xf]
    %v27 = vld [vmem:[%s1 + $0x30] sm:$0xf]
    %v28 = vld [vmem:[%s1 + $0x34] sm:$0xf]
    %v29 = vld [vmem:[%s1 + $0x38] sm:$0xf]
    %v30 = vld [vmem:[%s1 + $0x3c] sm:$0xf]
    %v47 = vunpack.c.l.b16 %v15
    %v48 = vunpack.c.l.b16 %v16
    %v49 = vunpack.c.l.b16 %v17
    %v50 = vunpack.c.l.b16 %v18
    %v51 = vunpack.c.l.b16 %v19
    %v52 = vunpack.c.l.b16 %v20
    %v53 = vunpack.c.l.b16 %v21
    %v54 = vunpack.c.l.b16 %v22
    %v55 = vunpack.c.l.b16 %v23
    %v56 = vunpack.c.l.b16 %v24
    %v57 = vunpack.c.l.b16 %v25
    %v58 = vunpack.c.l.b16 %v26
    %v59 = vunpack.c.l.b16 %v27
    %v60 = vunpack.c.l.b16 %v28
    %v61 = vunpack.c.l.b16 %v29
    %v62 = vunpack.c.l.b16 %v30
    %v63 = vpack.c.b16 %v48, %v47
    %v64 = vpack.c.b16 %v50, %v49
    %v65 = vpack.c.b16 %v52, %v51
    %v66 = vpack.c.b16 %v54, %v53
    %v67 = vpack.c.b16 %v56, %v55
    %v68 = vpack.c.b16 %v58, %v57
    %v69 = vpack.c.b16 %v60, %v59
    %v70 = vpack.c.b16 %v62, %v61
    %79 = vmatprep.subr.bf16.mxu0 0
    %80 = vmatpush1.bf16.msra.mxu0 %v63
    %81 = vmatprep.subr.bf16.mxu0 0
    %82 = vmatpush1.bf16.msra.mxu0 %v64
    %83 = vmatprep.subr.bf16.mxu0 0
    %84 = vmatpush1.bf16.msra.mxu0 %v65
    %85 = vmatprep.subr.bf16.mxu0 0
    %86 = vmatpush1.bf16.msra.mxu0 %v66
    %87 = vmatprep.subr.bf16.mxu0 0
    %88 = vmatpush1.bf16.msra.mxu0 %v67
    %89 = vmatprep.subr.bf16.mxu0 0
    %90 = vmatpush1.bf16.msra.mxu0 %v68
    %91 = vmatprep.subr.bf16.mxu0 0
    %92 = vmatpush1.bf16.msra.mxu0 %v69
    %93 = vmatprep.subr.bf16.mxu0 0
    %94 = vmatpush1.bf16.msra.mxu0 %v70
    %95 = vmatprep.subr.bf16.mxu0 0
    %96 = vmatpush1.bf16.msra.mxu0 0
    %97 = vmatprep.subr.bf16.mxu0 0
    %98 = vmatpush1.bf16.msra.mxu0 0
    %99 = vmatprep.subr.bf16.mxu0 0
    %100 = vmatpush1.bf16.msra.mxu0 0
    %101 = vmatprep.subr.bf16.mxu0 0
    %102 = vmatpush1.bf16.msra.mxu0 0
    %103 = vmatprep.subr.bf16.mxu0 0
    %104 = vmatpush1.bf16.msra.mxu0 0
    %105 = vmatprep.subr.bf16.mxu0 0
    %106 = vmatpush1.bf16.msra.mxu0 0
    %107 = vmatprep.subr.bf16.mxu0 0
    %108 = vmatpush1.bf16.msra.mxu0 0
    %109 = vmatprep.subr.bf16.mxu0 0
    %110 = vmatpush1.bf16.msra.mxu0 0
    %111 = vmatprep.mubr.bf16.mxu0 0
    %112 = vmatmul.mubr.bf16.gmra.mrb[0].mxu0 %v14
    %v113 = vpop.f32.mrb[0].mxu0
    %v114 = vadd.f32 0.0, %v113
    %v115 = vpop.f32.mrb[0].mxu0
    %v116 = vpop.f32.mrb[0].mxu0
    %v117 = vpop.f32.mrb[0].mxu0
    %118 = vdwg.mxu0
    %119 = vst [vmem:[#allocation2] sm:$0xff] %v114
    // Predicated region
    $region10: #{scaleup_embedding.1} parent=1 // pred_check
      _
    $region11: #{scaleup_embedding.1} parent=1 // pred_check_branch
      %121 = sbr.rel (0) target = $region13
    $region12: #{scaleup_embedding.1} parent=1 // pred_region
      %s123 = ssub.s32 128, 128
      %124 = vsyncadd [#allocation3], %s123
      %s126 = sshll.u32 [#allocation2], 4
      %s127 = int_to_ptr.vmem [resolvable:$true] %s126
      %129 = dma.vmem_to_hbm [thread:$0]  %s127, 128, %s2, [#allocation3]
    $region13: #{scaleup_embedding.1} parent=1 // pred_fallthru
      _
    // Predicated region
    $region14: #{scaleup_embedding.1} parent=1 // pred_check
      _
    $region15: #{scaleup_embedding.1} parent=1 // pred_check_branch
      %131 = sbr.rel (0) target = $region17
    $region16: #{scaleup_embedding.1} parent=1 // pred_region
      %132 = dma.done [#allocation3], 128
    $region17: #{scaleup_embedding.1} parent=1 // pred_fallthru
      _
    %133 = vsyncpa [#allocation3], 1

</llo_original>
